<compile_context>
chip_gen: v7x
topology: tpu7x:2x2x1
jax: 0.10.0
libtpu: 0.0.40
codegen_flags: <defaults>
</compile_context>

<pallas_src>
import jax
import jax.numpy as jnp
from jax.experimental import pallas as pl
from jax.experimental.pallas import tpu as pltpu

_HID = 64          # per-branch hidden width (PyTorch module uses 64)
_FH = 2 * _HID     # fused hidden / feature-slab width = 128 lanes


def _round_up(a, b):
    return (a + b - 1) // b * b


# ---------------------------------------------------------------------------
# Kernel: fused MLPs + scores + sigmoid on a 2-D output grid
# ---------------------------------------------------------------------------
def _relness_kernel(xr_ref, xc_ref, w1_ref, b1_ref, w2s_ref, b2s_ref,
                    w2o_ref, b2o_ref, out_ref, fs_ref):
    # Subject features for the row strip are reused across the whole inner-j
    # loop: recompute them only when a new row strip starts.
    @pl.when(pl.program_id(1) == 0)
    def _():
        h = jnp.dot(xr_ref[...], w1_ref[...],
                    preferred_element_type=jnp.float32) + b1_ref[...]
        h = jnp.maximum(h, 0.0).astype(jnp.bfloat16)
        fs = jnp.dot(h, w2s_ref[...],
                     preferred_element_type=jnp.float32) + b2s_ref[...]
        fs_ref[...] = fs.astype(jnp.bfloat16)          # (tm, 128) = [x_subj | 0]

    # Object features for the current column tile.
    h = jnp.dot(xc_ref[...], w1_ref[...],
                preferred_element_type=jnp.float32) + b1_ref[...]
    h = jnp.maximum(h, 0.0).astype(jnp.bfloat16)
    fo = (jnp.dot(h, w2o_ref[...],
                  preferred_element_type=jnp.float32) + b2o_ref[...]
          ).astype(jnp.bfloat16)                        # (tn, 128) = [x_obj | 0]

    # scores = x_subj @ x_obj.T.  Transposed-RHS contraction over all 128
    # lanes; the structural zero lanes add nothing.
    scores = jax.lax.dot_general(
        fs_ref[...], fo,
        dimension_numbers=(((1,), (1,)), ((), ())),
        preferred_element_type=jnp.float32)

    # sigmoid(x) = 0.5*tanh(0.5*x) + 0.5 : one transcendental per element.
    out_ref[...] = (0.5 * jnp.tanh(0.5 * scores) + 0.5).astype(out_ref.dtype)


# ---------------------------------------------------------------------------
# Wrapper
# ---------------------------------------------------------------------------
def _pack_params(p, d_pad):
    f32 = jnp.float32
    dim = p["w1s"].shape[0]
    zH = jnp.zeros((_HID, _HID), f32)
    zb = jnp.zeros((1, _HID), f32)
    # W1cat: x -> [h_subj | h_obj]  (dim_pad, 128)
    w1 = jnp.concatenate([p["w1s"], p["w1o"]], axis=1)
    w1 = jnp.pad(w1, ((0, d_pad - dim), (0, 0))).astype(jnp.bfloat16)
    b1 = jnp.concatenate([p["b1s"], p["b1o"]], axis=1).astype(f32)        # (1,128)
    # W2s: [h_s | h_o] -> [x_subj | 0];  W2o: [h_s | h_o] -> [x_obj | 0]
    w2s = jnp.block([[p["w2s"], zH], [zH, zH]]).astype(jnp.bfloat16)      # (128,128)
    b2s = jnp.concatenate([p["b2s"], zb], axis=1).astype(f32)             # (1,128)
    w2o = jnp.block([[zH, zH], [p["w2o"], zH]]).astype(jnp.bfloat16)      # (128,128)
    b2o = jnp.concatenate([p["b2o"], zb], axis=1).astype(f32)             # (1,128)
    return w1, b1, w2s, b2s, w2o, b2o


def _tiles(n, d_pad):
    """Returns (n_pad, tm, tn); n_pad divisible by tm and tn, tm >= tn."""
    # Cap tile height when the feature dim is large so the x row/col tiles
    # (double-buffered) + output tile stay inside ~32 MiB scoped VMEM
    # (v7x has only 64 MiB physical VMEM).
    cap = 1024 if d_pad <= 1536 else 512
    n_pad = _round_up(max(n, 1), 128)
    if n_pad <= cap:
        return n_pad, n_pad, n_pad
    n_pad = _round_up(n, 512)
    tm = cap if n_pad % cap == 0 else 512
    tn = 512
    return n_pad, tm, tn


def relationshipness_forward(x, params, out_dtype=jnp.bfloat16):
    N, dim = x.shape
    d_pad = _round_up(dim, 128)
    n_pad, tm, tn = _tiles(N, d_pad)

    w1, b1, w2s, b2s, w2o, b2o = _pack_params(params, d_pad)
    x_p = jnp.pad(x.astype(jnp.bfloat16), ((0, n_pad - N), (0, d_pad - dim)))

    mlp_flops_per_row = 2 * (d_pad * _FH + _FH * _FH)
    flops = int(2 * n_pad * n_pad * _FH                    # score matmul
                + n_pad * mlp_flops_per_row                # row MLP (once / strip)
                + (n_pad // tm) * n_pad * mlp_flops_per_row)  # col MLP per strip
    bytes_accessed = int(n_pad * d_pad * 2                 # x row strips (once)
                         + (n_pad // tm) * n_pad * d_pad * 2   # x col tiles, re-read per strip
                         + (d_pad * _FH + 2 * _FH * _FH) * 2 + 3 * _FH * 4
                         + n_pad * n_pad * jnp.dtype(out_dtype).itemsize)

    relness = pl.pallas_call(
        _relness_kernel,
        out_shape=jax.ShapeDtypeStruct((n_pad, n_pad), out_dtype),
        grid_spec=pltpu.PrefetchScalarGridSpec(
            num_scalar_prefetch=0,
            grid=(n_pad // tm, n_pad // tn),
            in_specs=[
                pl.BlockSpec((tm, d_pad), lambda i, j: (i, 0)),   # x rows
                pl.BlockSpec((tn, d_pad), lambda i, j: (j, 0)),   # x cols
                pl.BlockSpec((d_pad, _FH), lambda i, j: (0, 0)),  # W1cat
                pl.BlockSpec((1, _FH), lambda i, j: (0, 0)),      # b1cat
                pl.BlockSpec((_FH, _FH), lambda i, j: (0, 0)),    # W2s
                pl.BlockSpec((1, _FH), lambda i, j: (0, 0)),      # b2s
                pl.BlockSpec((_FH, _FH), lambda i, j: (0, 0)),    # W2o
                pl.BlockSpec((1, _FH), lambda i, j: (0, 0)),      # b2o
            ],
            out_specs=pl.BlockSpec((tm, tn), lambda i, j: (i, j)),
            scratch_shapes=[pltpu.VMEM((tm, _FH), jnp.bfloat16)],
        ),
        compiler_params=pltpu.CompilerParams(
            # i is independent (megacore-shardable); j carries the fs scratch
            # dependency (written at j == 0), so it must stay "arbitrary".
            dimension_semantics=("parallel", "arbitrary"),
            vmem_limit_bytes=32 * 1024 * 1024),
        cost_estimate=pl.CostEstimate(
            flops=flops,
            transcendentals=int(n_pad * n_pad),
            bytes_accessed=bytes_accessed),
    )(x_p, x_p, w1, b1, w2s, b2s, w2o, b2o)

    return relness[:N, :N]


# ---------------------------------------------------------------------------
# Params / reference (PyTorch-faithful, f32)
# ---------------------------------------------------------------------------
def _init_linear(key, fan_in, fan_out):
    """PyTorch nn.Linear default init: U(-1/sqrt(fan_in), 1/sqrt(fan_in))."""
    kw, kb = jax.random.split(key)
    bound = 1.0 / jnp.sqrt(float(fan_in))
    w = jax.random.uniform(kw, (fan_in, fan_out), jnp.float32, -bound, bound)
    b = jax.random.uniform(kb, (1, fan_out), jnp.float32, -bound, bound)
    return w, b


def init_params(key, dim, hidden=_HID):
    ks = jax.random.split(key, 4)
    w1s, b1s = _init_linear(ks[0], dim, hidden)
    w2s, b2s = _init_linear(ks[1], hidden, hidden)
    w1o, b1o = _init_linear(ks[2], dim, hidden)
    w2o, b2o = _init_linear(ks[3], hidden, hidden)
    return {
        "w1s": w1s, "b1s": b1s, "w2s": w2s, "b2s": b2s,
        "w1o": w1o, "b1o": b1o, "w2o": w2o, "b2o": b2o,
    }


def reference_forward(x, p):
    h_s = jnp.maximum(x @ p["w1s"] + p["b1s"], 0.0)
    x_subj = h_s @ p["w2s"] + p["b2s"]
    h_o = jnp.maximum(x @ p["w1o"] + p["b1o"], 0.0)
    x_obj = h_o @ p["w2o"] + p["b2o"]
    return jax.nn.sigmoid(x_subj @ x_obj.T)


if __name__ == "__main__":
    key = jax.random.PRNGKey(0)
    k_x, k_p = jax.random.split(key)

    N, dim = 16, 32  # N proposals, feature dim
    x = jax.random.normal(k_x, (N, dim), jnp.float32)
    params = init_params(k_p, dim)

    relness = relationshipness_forward(x, params)
    relness = jax.block_until_ready(relness)

    ref = reference_forward(x, params)
    assert relness.shape == (N, N)
    # bf16 MXU inputs + bf16 output (f32 accumulate / f32 sigmoid math)
    # -> loosened tolerance vs the f32 reference.
    err = jnp.max(jnp.abs(relness.astype(jnp.float32) - ref))
    assert jnp.allclose(relness.astype(jnp.float32), ref, atol=3e-2, rtol=0.0), float(err)

    print("KERNEL_OK")
</pallas_src>

<mosaic_0001>
module attributes {stable_mosaic.version = 11 : i64} {
  func.func @_relness_kernel(%arg0: i32, %arg1: i32, %arg2: memref<128x128xbf16, #tpu.memory_space<vmem>>, %arg3: memref<128x128xbf16, #tpu.memory_space<vmem>>, %arg4: memref<128x128xbf16, #tpu.memory_space<vmem>>, %arg5: memref<1x128xf32, #tpu.memory_space<vmem>>, %arg6: memref<128x128xbf16, #tpu.memory_space<vmem>>, %arg7: memref<1x128xf32, #tpu.memory_space<vmem>>, %arg8: memref<128x128xbf16, #tpu.memory_space<vmem>>, %arg9: memref<1x128xf32, #tpu.memory_space<vmem>>, %arg10: memref<128x128xbf16, #tpu.memory_space<vmem>>, %arg11: memref<128x128xbf16, #tpu.memory_space<vmem>>) attributes {dimension_semantics = [#tpu.dimension_semantics<parallel>, #tpu.dimension_semantics<arbitrary>], iteration_bounds = array<i64: 1, 1>, scalar_prefetch = 0 : i64, scratch_operands = 1 : i64, tpu.core_type = #tpu.core_type<tc>, window_params = [{transform_indices = @transform_0, window_bounds = array<i64: 128, 128>}, {transform_indices = @transform_1, window_bounds = array<i64: 128, 128>}, {pipeline_mode = #tpu.pipeline_mode<synchronous>, transform_indices = @transform_2, window_bounds = array<i64: 128, 128>}, {pipeline_mode = #tpu.pipeline_mode<synchronous>, transform_indices = @transform_3, window_bounds = array<i64: 1, 128>}, {pipeline_mode = #tpu.pipeline_mode<synchronous>, transform_indices = @transform_4, window_bounds = array<i64: 128, 128>}, {pipeline_mode = #tpu.pipeline_mode<synchronous>, transform_indices = @transform_5, window_bounds = array<i64: 1, 128>}, {pipeline_mode = #tpu.pipeline_mode<synchronous>, transform_indices = @transform_6, window_bounds = array<i64: 128, 128>}, {pipeline_mode = #tpu.pipeline_mode<synchronous>, transform_indices = @transform_7, window_bounds = array<i64: 1, 128>}, {transform_indices = @transform_8, window_bounds = array<i64: 128, 128>}]} {
    %c0_i32 = arith.constant 0 : i32
    %0 = arith.cmpi eq, %arg1, %c0_i32 : i32
    %1 = arith.extui %0 : i1 to i32
    %c0_i32_0 = arith.constant 0 : i32
    %2 = arith.cmpi ne, %1, %c0_i32_0 : i32
    scf.if %2 {
      %c0_20 = arith.constant 0 : index
      %c0_21 = arith.constant 0 : index
      %29 = vector.load %arg2[%c0_20, %c0_21] : memref<128x128xbf16, #tpu.memory_space<vmem>>, vector<128x128xbf16>
      %c0_22 = arith.constant 0 : index
      %c0_23 = arith.constant 0 : index
      %30 = vector.load %arg4[%c0_22, %c0_23] : memref<128x128xbf16, #tpu.memory_space<vmem>>, vector<128x128xbf16>
      %cst_24 = arith.constant dense<0.000000e+00> : vector<128x128xf32>
      %31 = tpu.matmul %29, %30, %cst_24 {dimension_numbers = #tpu.dot_dimension_numbers<[1], [0], [0], [1], [0, 0, 1, 1], [], []>} : vector<128x128xbf16>, vector<128x128xbf16>, vector<128x128xf32> -> vector<128x128xf32>
      %c0_25 = arith.constant 0 : index
      %c0_26 = arith.constant 0 : index
      %32 = vector.load %arg5[%c0_25, %c0_26] : memref<1x128xf32, #tpu.memory_space<vmem>>, vector<1x128xf32>
      %33 = vector.broadcast %32 : vector<1x128xf32> to vector<128x128xf32>
      %34 = arith.addf %31, %33 : vector<128x128xf32>
      %cst_27 = arith.constant 0.000000e+00 : f32
      %35 = vector.broadcast %cst_27 : f32 to vector<128x128xf32>
      %36 = arith.maximumf %34, %35 : vector<128x128xf32>
      %37 = arith.truncf %36 : vector<128x128xf32> to vector<128x128xbf16>
      %c0_28 = arith.constant 0 : index
      %c0_29 = arith.constant 0 : index
      %38 = vector.load %arg6[%c0_28, %c0_29] : memref<128x128xbf16, #tpu.memory_space<vmem>>, vector<128x128xbf16>
      %cst_30 = arith.constant dense<0.000000e+00> : vector<128x128xf32>
      %39 = tpu.matmul %37, %38, %cst_30 {dimension_numbers = #tpu.dot_dimension_numbers<[1], [0], [0], [1], [0, 0, 1, 1], [], []>} : vector<128x128xbf16>, vector<128x128xbf16>, vector<128x128xf32> -> vector<128x128xf32>
      %c0_31 = arith.constant 0 : index
      %c0_32 = arith.constant 0 : index
      %40 = vector.load %arg7[%c0_31, %c0_32] : memref<1x128xf32, #tpu.memory_space<vmem>>, vector<1x128xf32>
      %41 = vector.broadcast %40 : vector<1x128xf32> to vector<128x128xf32>
      %42 = arith.addf %39, %41 : vector<128x128xf32>
      %43 = arith.truncf %42 : vector<128x128xf32> to vector<128x128xbf16>
      %c0_33 = arith.constant 0 : index
      %c0_34 = arith.constant 0 : index
      %44 = vector.load %arg11[%c0_33, %c0_34] : memref<128x128xbf16, #tpu.memory_space<vmem>>, vector<128x128xbf16>
      tpu.vector_store %arg11[%c0_33, %c0_34], %43 {strides = array<i32>} : memref<128x128xbf16, #tpu.memory_space<vmem>>, vector<128x128xbf16>,
    } else {
    }
    %c0 = arith.constant 0 : index
    %c0_1 = arith.constant 0 : index
    %3 = vector.load %arg3[%c0, %c0_1] : memref<128x128xbf16, #tpu.memory_space<vmem>>, vector<128x128xbf16>
    %c0_2 = arith.constant 0 : index
    %c0_3 = arith.constant 0 : index
    %4 = vector.load %arg4[%c0_2, %c0_3] : memref<128x128xbf16, #tpu.memory_space<vmem>>, vector<128x128xbf16>
    %cst = arith.constant dense<0.000000e+00> : vector<128x128xf32>
    %5 = tpu.matmul %3, %4, %cst {dimension_numbers = #tpu.dot_dimension_numbers<[1], [0], [0], [1], [0, 0, 1, 1], [], []>} : vector<128x128xbf16>, vector<128x128xbf16>, vector<128x128xf32> -> vector<128x128xf32>
    %c0_4 = arith.constant 0 : index
    %c0_5 = arith.constant 0 : index
    %6 = vector.load %arg5[%c0_4, %c0_5] : memref<1x128xf32, #tpu.memory_space<vmem>>, vector<1x128xf32>
    %7 = vector.broadcast %6 : vector<1x128xf32> to vector<128x128xf32>
    %8 = arith.addf %5, %7 : vector<128x128xf32>
    %cst_6 = arith.constant 0.000000e+00 : f32
    %9 = vector.broadcast %cst_6 : f32 to vector<128x128xf32>
    %10 = arith.maximumf %8, %9 : vector<128x128xf32>
    %11 = arith.truncf %10 : vector<128x128xf32> to vector<128x128xbf16>
    %c0_7 = arith.constant 0 : index
    %c0_8 = arith.constant 0 : index
    %12 = vector.load %arg8[%c0_7, %c0_8] : memref<128x128xbf16, #tpu.memory_space<vmem>>, vector<128x128xbf16>
    %cst_9 = arith.constant dense<0.000000e+00> : vector<128x128xf32>
    %13 = tpu.matmul %11, %12, %cst_9 {dimension_numbers = #tpu.dot_dimension_numbers<[1], [0], [0], [1], [0, 0, 1, 1], [], []>} : vector<128x128xbf16>, vector<128x128xbf16>, vector<128x128xf32> -> vector<128x128xf32>
    %c0_10 = arith.constant 0 : index
    %c0_11 = arith.constant 0 : index
    %14 = vector.load %arg9[%c0_10, %c0_11] : memref<1x128xf32, #tpu.memory_space<vmem>>, vector<1x128xf32>
    %15 = vector.broadcast %14 : vector<1x128xf32> to vector<128x128xf32>
    %16 = arith.addf %13, %15 : vector<128x128xf32>
    %17 = arith.truncf %16 : vector<128x128xf32> to vector<128x128xbf16>
    %c0_12 = arith.constant 0 : index
    %c0_13 = arith.constant 0 : index
    %18 = vector.load %arg11[%c0_12, %c0_13] : memref<128x128xbf16, #tpu.memory_space<vmem>>, vector<128x128xbf16>
    %cst_14 = arith.constant dense<0.000000e+00> : vector<128x128xf32>
    %19 = tpu.matmul %18, %17, %cst_14 {dimension_numbers = #tpu.dot_dimension_numbers<[1], [1], [0], [0], [0, 0, 1, 0], [], []>} : vector<128x128xbf16>, vector<128x128xbf16>, vector<128x128xf32> -> vector<128x128xf32>
    %cst_15 = arith.constant 5.000000e-01 : f32
    %20 = vector.broadcast %cst_15 : f32 to vector<128x128xf32>
    %21 = arith.mulf %20, %19 : vector<128x128xf32>
    %22 = math.tanh %21 : vector<128x128xf32>
    %cst_16 = arith.constant 5.000000e-01 : f32
    %23 = vector.broadcast %cst_16 : f32 to vector<128x128xf32>
    %24 = arith.mulf %23, %22 : vector<128x128xf32>
    %cst_17 = arith.constant 5.000000e-01 : f32
    %25 = vector.broadcast %cst_17 : f32 to vector<128x128xf32>
    %26 = arith.addf %24, %25 : vector<128x128xf32>
    %27 = arith.truncf %26 : vector<128x128xf32> to vector<128x128xbf16>
    %c0_18 = arith.constant 0 : index
    %c0_19 = arith.constant 0 : index
    %28 = vector.load %arg10[%c0_18, %c0_19] : memref<128x128xbf16, #tpu.memory_space<vmem>>, vector<128x128xbf16>
    tpu.vector_store %arg10[%c0_18, %c0_19], %27 {strides = array<i32>} : memref<128x128xbf16, #tpu.memory_space<vmem>>, vector<128x128xbf16>,
    return
  }
  func.func @transform_0(%arg0: i32, %arg1: i32) -> (i32, i32) {
    %c0_i32 = arith.constant 0 : i32
    %c0_i32_0 = arith.constant 0 : i32
    return %arg0, %c0_i32 : i32, i32
  }
  func.func @transform_1(%arg0: i32, %arg1: i32) -> (i32, i32) {
    %c0_i32 = arith.constant 0 : i32
    %c0_i32_0 = arith.constant 0 : i32
    return %arg1, %c0_i32 : i32, i32
  }
  func.func @transform_2(%arg0: i32, %arg1: i32) -> (i32, i32) {
    %c0_i32 = arith.constant 0 : i32
    %c0_i32_0 = arith.constant 0 : i32
    %c0_i32_1 = arith.constant 0 : i32
    return %c0_i32, %c0_i32_0 : i32, i32
  }
  func.func @transform_3(%arg0: i32, %arg1: i32) -> (i32, i32) {
    %c0_i32 = arith.constant 0 : i32
    %c0_i32_0 = arith.constant 0 : i32
    %c0_i32_1 = arith.constant 0 : i32
    return %c0_i32, %c0_i32_0 : i32, i32
  }
  func.func @transform_4(%arg0: i32, %arg1: i32) -> (i32, i32) {
    %c0_i32 = arith.constant 0 : i32
    %c0_i32_0 = arith.constant 0 : i32
    %c0_i32_1 = arith.constant 0 : i32
    return %c0_i32, %c0_i32_0 : i32, i32
  }
  func.func @transform_5(%arg0: i32, %arg1: i32) -> (i32, i32) {
    %c0_i32 = arith.constant 0 : i32
    %c0_i32_0 = arith.constant 0 : i32
    %c0_i32_1 = arith.constant 0 : i32
    return %c0_i32, %c0_i32_0 : i32, i32
  }
  func.func @transform_6(%arg0: i32, %arg1: i32) -> (i32, i32) {
    %c0_i32 = arith.constant 0 : i32
    %c0_i32_0 = arith.constant 0 : i32
    %c0_i32_1 = arith.constant 0 : i32
    return %c0_i32, %c0_i32_0 : i32, i32
  }
  func.func @transform_7(%arg0: i32, %arg1: i32) -> (i32, i32) {
    %c0_i32 = arith.constant 0 : i32
    %c0_i32_0 = arith.constant 0 : i32
    %c0_i32_1 = arith.constant 0 : i32
    return %c0_i32, %c0_i32_0 : i32, i32
  }
  func.func @transform_8(%arg0: i32, %arg1: i32) -> (i32, i32) {
    %c0_i32 = arith.constant 0 : i32
    return %arg0, %arg1 : i32, i32
  }
}

</mosaic_0001>

<llo_original>
// kernel: tpu_custom_call.1
$region0: #{tpu_custom_call.1}
  #allocation0 [shape = 'u32[]', space=smem, size = 0x4, offset = 0x4, fixed_abs, tag = 'smem constant byte address 0x4 - core index']
  #allocation1 [shape = 'u32[144,128]{1,0:T(1,128)}', space=vmem, size = 0x12000, scoped, tag = 'internal scratch']
  #allocation2 [shape = 'bf16[128,128]{1,0:T(16,128)(2,1)}', space=vmem, size = 0x8000, scoped, tag = 'scratch operand']
  %s0 = inlined_call_operand.hbm [shape: bf16[128,128], index: 0, kind: input, shape index: {}]
  %s1 = inlined_call_operand.hbm [shape: bf16[128,128], index: 1, kind: input, shape index: {}]
  %s2 = inlined_call_operand.hbm [shape: bf16[128,128], index: 2, kind: input, shape index: {}]
  %s3 = inlined_call_operand.vmem [shape: f32[1,128], index: 3, kind: input, shape index: {}]
  %s4 = inlined_call_operand.hbm [shape: bf16[128,128], index: 4, kind: input, shape index: {}]
  %s5 = inlined_call_operand.vmem [shape: f32[1,128], index: 5, kind: input, shape index: {}]
  %s6 = inlined_call_operand.hbm [shape: bf16[128,128], index: 6, kind: input, shape index: {}]
  %s7 = inlined_call_operand.vmem [shape: f32[1,128], index: 7, kind: input, shape index: {}]
  %s8 = inlined_call_operand.hbm [shape: bf16[128,128], index: 8, kind: output, shape index: {}]
  %s9 = sld [smem:[#allocation0]]
  $region66: #{tpu_custom_call.1} parent=0
    _
  %s11 = ssub.s32 1, %s9
  %s12 = scalar_select 0, %s11, %s9
  $region1: #{tpu_custom_call.1} parent=0
    #allocation3 [shape = 'u8[32768]{0}', space=vmem, size = 0x8000, scoped, tag = 'input window, operand 0, single buffered']
    #allocation4 [shape = 's32[1]{0}', space=sflag, size = 0x4, scoped, tag = 'scoped memory for tpu_custom_call.1']
    #allocation5 [shape = 's32[1]{0}', space=sflag, size = 0x4, scoped, tag = 'scoped memory for tpu_custom_call.1']
    #allocation6 [shape = 'u8[32768]{0}', space=vmem, size = 0x8000, scoped, tag = 'input window, operand 1, single buffered']
    #allocation7 [shape = 's32[1]{0}', space=sflag, size = 0x4, scoped, tag = 'scoped memory for tpu_custom_call.1']
    #allocation8 [shape = 'u8[32768]{0}', space=vmem, size = 0x8000, scoped, tag = 'input window, operand 2, single buffered']
    #allocation9 [shape = 'u8[32768]{0}', space=vmem, size = 0x8000, scoped, tag = 'input window, operand 4, single buffered']
    #allocation10 [shape = 's32[1]{0}', space=sflag, size = 0x4, scoped, tag = 'scoped memory for tpu_custom_call.1']
    #allocation11 [shape = 'u8[32768]{0}', space=vmem, size = 0x8000, scoped, tag = 'input window, operand 6, single buffered']
    #allocation12 [shape = 'u8[32768]{0}', space=vmem, size = 0x8000, scoped, tag = 'output window, operand 0, single buffered']
    %13 = vsyncpa [#allocation4], 0
    %14 = vsyncpa [#allocation7], 0
    %15 = vsyncpa [#allocation10], 0
    %16 = vsyncpa [#allocation5], 0
    // Predicated region
    $region2: #{tpu_custom_call.1} parent=1 // pred_check
      _
    $region3: #{tpu_custom_call.1} parent=1 // pred_check_branch
      %18 = sbr.rel (0) target = $region5
    $region4: #{tpu_custom_call.1} parent=1 // pred_region
      %s20 = ssub.s32 1024, 1024
      %21 = vsyncadd [#allocation4], %s20
      %s22 = sshll.u32 [#allocation3], 4
      %s23 = int_to_ptr.vmem [resolvable:$true] %s22
      %28 = dma.hbm_to_vmem [thread:$0]  %s0, 1024, %s23, [#allocation4], 64, 64, 4
    $region5: #{tpu_custom_call.1} parent=1 // pred_fallthru
      _
    // Predicated region
    $region6: #{tpu_custom_call.1} parent=1 // pred_check
      _
    $region7: #{tpu_custom_call.1} parent=1 // pred_check_branch
      %30 = sbr.rel (0) target = $region9
    $region8: #{tpu_custom_call.1} parent=1 // pred_region
      %s32 = ssub.s32 1024, 1024
      %33 = vsyncadd [#allocation7], %s32
      %s34 = sshll.u32 [#allocation6], 4
      %s35 = int_to_ptr.vmem [resolvable:$true] %s34
      %40 = dma.hbm_to_vmem [thread:$0]  %s1, 1024, %s35, [#allocation7], 64, 64, 4
    $region9: #{tpu_custom_call.1} parent=1 // pred_fallthru
      _
    // Predicated region
    $region10: #{tpu_custom_call.1} parent=1 // pred_check
      _
    $region11: #{tpu_custom_call.1} parent=1 // pred_check_branch
      %42 = sbr.rel (0) target = $region13
    $region12: #{tpu_custom_call.1} parent=1 // pred_region
      %s44 = ssub.s32 1024, 1024
      %45 = vsyncadd [#allocation7], %s44
      %s46 = sshll.u32 [#allocation8], 4
      %s47 = int_to_ptr.vmem [resolvable:$true] %s46
      %52 = dma.hbm_to_vmem [thread:$0]  %s2, 1024, %s47, [#allocation7], 64, 64, 4
    $region13: #{tpu_custom_call.1} parent=1 // pred_fallthru
      _
    // Predicated region
    $region14: #{tpu_custom_call.1} parent=1 // pred_check
      _
    $region15: #{tpu_custom_call.1} parent=1 // pred_check_branch
      %54 = sbr.rel (0) target = $region17
    $region16: #{tpu_custom_call.1} parent=1 // pred_region
      _
    $region17: #{tpu_custom_call.1} parent=1 // pred_fallthru
      _
    // Predicated region
    $region18: #{tpu_custom_call.1} parent=1 // pred_check
      _
    $region19: #{tpu_custom_call.1} parent=1 // pred_check_branch
      %56 = sbr.rel (0) target = $region21
    $region20: #{tpu_custom_call.1} parent=1 // pred_region
      %s58 = ssub.s32 1024, 1024
      %59 = vsyncadd [#allocation10], %s58
      %s60 = sshll.u32 [#allocation9], 4
      %s61 = int_to_ptr.vmem [resolvable:$true] %s60
      %66 = dma.hbm_to_vmem [thread:$0]  %s4, 1024, %s61, [#allocation10], 64, 64, 4
    $region21: #{tpu_custom_call.1} parent=1 // pred_fallthru
      _
    // Predicated region
    $region22: #{tpu_custom_call.1} parent=1 // pred_check
      _
    $region23: #{tpu_custom_call.1} parent=1 // pred_check_branch
      %68 = sbr.rel (0) target = $region25
    $region24: #{tpu_custom_call.1} parent=1 // pred_region
      _
    $region25: #{tpu_custom_call.1} parent=1 // pred_fallthru
      _
    // Predicated region
    $region26: #{tpu_custom_call.1} parent=1 // pred_check
      _
    $region27: #{tpu_custom_call.1} parent=1 // pred_check_branch
      %70 = sbr.rel (0) target = $region29
    $region28: #{tpu_custom_call.1} parent=1 // pred_region
      %s72 = ssub.s32 1024, 1024
      %73 = vsyncadd [#allocation10], %s72
      %s74 = sshll.u32 [#allocation11], 4
      %s75 = int_to_ptr.vmem [resolvable:$true] %s74
      %80 = dma.hbm_to_vmem [thread:$0]  %s6, 1024, %s75, [#allocation10], 64, 64, 4
    $region29: #{tpu_custom_call.1} parent=1 // pred_fallthru
      _
    // Predicated region
    $region30: #{tpu_custom_call.1} parent=1 // pred_check
      _
    $region31: #{tpu_custom_call.1} parent=1 // pred_check_branch
      %82 = sbr.rel (0) target = $region33
    $region32: #{tpu_custom_call.1} parent=1 // pred_region
      _
    $region33: #{tpu_custom_call.1} parent=1 // pred_fallthru
      _
    // Predicated region
    $region34: #{tpu_custom_call.1} parent=1 // pred_check
      _
    $region35: #{tpu_custom_call.1} parent=1 // pred_check_branch
      %84 = sbr.rel (0) target = $region37
    $region36: #{tpu_custom_call.1} parent=1 // pred_region
      %85 = dma.done [#allocation4], 1024
    $region37: #{tpu_custom_call.1} parent=1 // pred_fallthru
      _
    // Predicated region
    $region38: #{tpu_custom_call.1} parent=1 // pred_check
      _
    $region39: #{tpu_custom_call.1} parent=1 // pred_check_branch
      %87 = sbr.rel (0) target = $region41
    $region40: #{tpu_custom_call.1} parent=1 // pred_region
      %88 = dma.done [#allocation7], 1024
    $region41: #{tpu_custom_call.1} parent=1 // pred_fallthru
      _
    // Predicated region
    $region42: #{tpu_custom_call.1} parent=1 // pred_check
      _
    $region43: #{tpu_custom_call.1} parent=1 // pred_check_branch
      %90 = sbr.rel (0) target = $region45
    $region44: #{tpu_custom_call.1} parent=1 // pred_region
      %91 = dma.done [#allocation7], 1024
    $region45: #{tpu_custom_call.1} parent=1 // pred_fallthru
      _
    // Predicated region
    $region46: #{tpu_custom_call.1} parent=1 // pred_check
      _
    $region47: #{tpu_custom_call.1} parent=1 // pred_check_branch
      %93 = sbr.rel (0) target = $region49
    $region48: #{tpu_custom_call.1} parent=1 // pred_region
      %94 = dma.done [#allocation10], 1024
    $region49: #{tpu_custom_call.1} parent=1 // pred_fallthru
      _
    // Predicated region
    $region50: #{tpu_custom_call.1} parent=1 // pred_check
      _
    $region51: #{tpu_custom_call.1} parent=1 // pred_check_branch
      %96 = sbr.rel (0) target = $region53
    $region52: #{tpu_custom_call.1} parent=1 // pred_region
      %97 = dma.done [#allocation10], 1024
    $region53: #{tpu_custom_call.1} parent=1 // pred_fallthru
      _
    %p99 = scmp.eq.s32.totalorder 0, 0
    // Predicated region
    $region54: #{tpu_custom_call.1} parent=1 // pred_check
      %p100 = pneg %p99
    $region55: #{tpu_custom_call.1} parent=1 // pred_check_branch
      %102 = sbr.rel (%p100) target = $region57
    $region56: #{tpu_custom_call.1} parent=1 // pred_region
      %v103 = vld [vmem:[#allocation3] sm:$0xf]
      %v104 = vld [vmem:[#allocation3 + $0x4] sm:$0xf]
      %v105 = vld [vmem:[#allocation3 + $0x8] sm:$0xf]
      %v106 = vld [vmem:[#allocation3 + $0xc] sm:$0xf]
      %v107 = vld [vmem:[#allocation3 + $0x10] sm:$0xf]
      %v108 = vld [vmem:[#allocation3 + $0x14] sm:$0xf]
      %v109 = vld [vmem:[#allocation3 + $0x18] sm:$0xf]
      %v110 = vld [vmem:[#allocation3 + $0x1c] sm:$0xf]
      %v111 = vld [vmem:[#allocation3 + $0x20] sm:$0xf]
      %v112 = vld [vmem:[#allocation3 + $0x24] sm:$0xf]
      %v113 = vld [vmem:[#allocation3 + $0x28] sm:$0xf]
      %v114 = vld [vmem:[#allocation3 + $0x2c] sm:$0xf]
      %v115 = vld [vmem:[#allocation3 + $0x30] sm:$0xf]
      %v116 = vld [vmem:[#allocation3 + $0x34] sm:$0xf]
      %v117 = vld [vmem:[#allocation3 + $0x38] sm:$0xf]
      %v118 = vld [vmem:[#allocation3 + $0x3c] sm:$0xf]
      %v119 = vld [vmem:[#allocation8] sm:$0xf]
      %v120 = vld [vmem:[#allocation8 + $0x4] sm:$0xf]
      %v121 = vld [vmem:[#allocation8 + $0x8] sm:$0xf]
      %v122 = vld [vmem:[#allocation8 + $0xc] sm:$0xf]
      %v123 = vld [vmem:[#allocation8 + $0x10] sm:$0xf]
      %v124 = vld [vmem:[#allocation8 + $0x14] sm:$0xf]
      %v125 = vld [vmem:[#allocation8 + $0x18] sm:$0xf]
      %v126 = vld [vmem:[#allocation8 + $0x1c] sm:$0xf]
      %v127 = vld [vmem:[#allocation8 + $0x20] sm:$0xf]
      %v128 = vld [vmem:[#allocation8 + $0x24] sm:$0xf]
      %v129 = vld [vmem:[#allocation8 + $0x28] sm:$0xf]
      %v130 = vld [vmem:[#allocation8 + $0x2c] sm:$0xf]
      %v131 = vld [vmem:[#allocation8 + $0x30] sm:$0xf]
      %v132 = vld [vmem:[#allocation8 + $0x34] sm:$0xf]
      %v133 = vld [vmem:[#allocation8 + $0x38] sm:$0xf]
      %v134 = vld [vmem:[#allocation8 + $0x3c] sm:$0xf]
      %v135 = vld [vmem:[%s3] sm:$0x1]
      %v137 = vlaneseq
      %v138 = vshrl.u32 %v137, 7
      %v139 = vsub.s32 0, %v138
      %v140 = vrot.slane %v135, %v139
      %v158 = vunpack.c.l.b16 %v103
      %v159 = vunpack.c.l.b16 %v104
      %v160 = vunpack.c.l.b16 %v105
      %v161 = vunpack.c.l.b16 %v106
      %v162 = vunpack.c.l.b16 %v107
      %v163 = vunpack.c.l.b16 %v108
      %v164 = vunpack.c.l.b16 %v109
      %v165 = vunpack.c.l.b16 %v110
      %v166 = vunpack.c.l.b16 %v111
      %v167 = vunpack.c.l.b16 %v112
      %v168 = vunpack.c.l.b16 %v113
      %v169 = vunpack.c.l.b16 %v114
      %v170 = vunpack.c.l.b16 %v115
      %v171 = vunpack.c.l.b16 %v116
      %v172 = vunpack.c.l.b16 %v117
      %v173 = vunpack.c.l.b16 %v118
      %v174 = vpack.c.b16 %v159, %v158
      %v175 = vpack.c.b16 %v161, %v160
      %v176 = vpack.c.b16 %v163, %v162
      %v177 = vpack.c.b16 %v165, %v164
      %v178 = vpack.c.b16 %v167, %v166
      %v179 = vpack.c.b16 %v169, %v168
      %v180 = vpack.c.b16 %v171, %v170
      %v181 = vpack.c.b16 %v173, %v172
      %v206 = vunpack.c.l.b16 %v119
      %v207 = vunpack.c.l.b16 %v120
      %v208 = vunpack.c.l.b16 %v121
      %v209 = vunpack.c.l.b16 %v122
      %v210 = vunpack.c.l.b16 %v123
      %v211 = vunpack.c.l.b16 %v124
      %v212 = vunpack.c.l.b16 %v125
      %v213 = vunpack.c.l.b16 %v126
      %v214 = vunpack.c.l.b16 %v127
      %v215 = vunpack.c.l.b16 %v128
      %v216 = vunpack.c.l.b16 %v129
      %v217 = vunpack.c.l.b16 %v130
      %v218 = vunpack.c.l.b16 %v131
      %v219 = vunpack.c.l.b16 %v132
      %v220 = vunpack.c.l.b16 %v133
      %v221 = vunpack.c.l.b16 %v134
      %v222 = vpack.c.b16 %v207, %v206
      %v223 = vpack.c.b16 %v209, %v208
      %v224 = vpack.c.b16 %v211, %v210
      %v225 = vpack.c.b16 %v213, %v212
      %v226 = vpack.c.b16 %v215, %v214
      %v227 = vpack.c.b16 %v217, %v216
      %v228 = vpack.c.b16 %v219, %v218
      %v229 = vpack.c.b16 %v221, %v220
      %238 = vmatprep.subr.bf16.mxu0 0
      %239 = vmatpush1.bf16.msra.mxu0 %v222
      %240 = vmatprep.subr.bf16.mxu0 0
      %241 = vmatpush1.bf16.msra.mxu0 %v223
      %242 = vmatprep.subr.bf16.mxu0 0
      %243 = vmatpush1.bf16.msra.mxu0 %v224
      %244 = vmatprep.subr.bf16.mxu0 0
      %245 = vmatpush1.bf16.msra.mxu0 %v225
      %246 = vmatprep.subr.bf16.mxu0 0
      %247 = vmatpush1.bf16.msra.mxu0 %v226
      %248 = vmatprep.subr.bf16.mxu0 0
      %249 = vmatpush1.bf16.msra.mxu0 %v227
      %250 = vmatprep.subr.bf16.mxu0 0
      %251 = vmatpush1.bf16.msra.mxu0 %v228
      %252 = vmatprep.subr.bf16.mxu0 0
      %253 = vmatpush1.bf16.msra.mxu0 %v229
      %254 = vmatprep.subr.bf16.mxu0 0
      %255 = vmatpush1.bf16.msra.mxu0 0
      %256 = vmatprep.subr.bf16.mxu0 0
      %257 = vmatpush1.bf16.msra.mxu0 0
      %258 = vmatprep.subr.bf16.mxu0 0
      %259 = vmatpush1.bf16.msra.mxu0 0
      %260 = vmatprep.subr.bf16.mxu0 0
      %261 = vmatpush1.bf16.msra.mxu0 0
      %262 = vmatprep.subr.bf16.mxu0 0
      %263 = vmatpush1.bf16.msra.mxu0 0
      %264 = vmatprep.subr.bf16.mxu0 0
      %265 = vmatpush1.bf16.msra.mxu0 0
      %266 = vmatprep.subr.bf16.mxu0 0
      %267 = vmatpush1.bf16.msra.mxu0 0
      %268 = vmatprep.subr.bf16.mxu0 0
      %269 = vmatpush1.bf16.msra.mxu0 0
      %270 = vmatprep.mubr.bf16.mxu0 0
      %271 = vmatmul.mubr.bf16.gmra.mrb[0].mxu0 %v174
      %v272 = vpop.f32.mrb[0].mxu0
      %v273 = vadd.f32 %v140, %v272
      %v274 = vpop.f32.mrb[0].mxu0
      %v275 = vpop.f32.mrb[0].mxu0
      %v276 = vadd.f32 %v140, %v275
      %v277 = vpop.f32.mrb[0].mxu0
      %278 = vmatprep.mubr.bf16.mxu0 0
      %279 = vmatmul.mubr.bf16.gmra.mrb[0].mxu0 %v175
      %v280 = vpop.f32.mrb[0].mxu0
      %v281 = vadd.f32 %v140, %v280
      %v282 = vpop.f32.mrb[0].mxu0
      %v283 = vpop.f32.mrb[0].mxu0
      %v284 = vadd.f32 %v140, %v283
      %v285 = vpop.f32.mrb[0].mxu0
      %286 = vmatprep.mubr.bf16.mxu0 0
      %287 = vmatmul.mubr.bf16.gmra.mrb[0].mxu0 %v176
      %v288 = vpop.f32.mrb[0].mxu0
      %v289 = vadd.f32 %v140, %v288
      %v290 = vpop.f32.mrb[0].mxu0
      %v291 = vpop.f32.mrb[0].mxu0
      %v292 = vadd.f32 %v140, %v291
      %v293 = vpop.f32.mrb[0].mxu0
      %294 = vmatprep.mubr.bf16.mxu0 0
      %295 = vmatmul.mubr.bf16.gmra.mrb[0].mxu0 %v177
      %v296 = vpop.f32.mrb[0].mxu0
      %v297 = vadd.f32 %v140, %v296
      %v298 = vpop.f32.mrb[0].mxu0
      %v299 = vpop.f32.mrb[0].mxu0
      %v300 = vadd.f32 %v140, %v299
      %v301 = vpop.f32.mrb[0].mxu0
      %302 = vmatprep.mubr.bf16.mxu0 0
      %303 = vmatmul.mubr.bf16.gmra.mrb[0].mxu0 %v178
      %v304 = vpop.f32.mrb[0].mxu0
      %v305 = vadd.f32 %v140, %v304
      %v306 = vpop.f32.mrb[0].mxu0
      %v307 = vpop.f32.mrb[0].mxu0
      %v308 = vadd.f32 %v140, %v307
      %v309 = vpop.f32.mrb[0].mxu0
      %310 = vmatprep.mubr.bf16.mxu0 0
      %311 = vmatmul.mubr.bf16.gmra.mrb[0].mxu0 %v179
      %v312 = vpop.f32.mrb[0].mxu0
      %v313 = vadd.f32 %v140, %v312
      %v314 = vpop.f32.mrb[0].mxu0
      %v315 = vpop.f32.mrb[0].mxu0
      %v316 = vadd.f32 %v140, %v315
      %v317 = vpop.f32.mrb[0].mxu0
      %318 = vmatprep.mubr.bf16.mxu0 0
      %319 = vmatmul.mubr.bf16.gmra.mrb[0].mxu0 %v180
      %v320 = vpop.f32.mrb[0].mxu0
      %v321 = vadd.f32 %v140, %v320
      %v322 = vpop.f32.mrb[0].mxu0
      %v323 = vpop.f32.mrb[0].mxu0
      %v324 = vadd.f32 %v140, %v323
      %v325 = vpop.f32.mrb[0].mxu0
      %326 = vmatprep.mubr.bf16.mxu0 0
      %327 = vmatmul.mubr.bf16.gmra.mrb[0].mxu0 %v181
      %v328 = vpop.f32.mrb[0].mxu0
      %v329 = vadd.f32 %v140, %v328
      %v330 = vpop.f32.mrb[0].mxu0
      %v331 = vpop.f32.mrb[0].mxu0
      %v332 = vadd.f32 %v140, %v331
      %v333 = vpop.f32.mrb[0].mxu0
      %334 = vdwg.mxu0
      %v335 = vmax.f32 %v273, 0.0
      %v336 = vmax.f32 %v276, 0.0
      %v337 = vmax.f32 %v281, 0.0
      %v338 = vmax.f32 %v284, 0.0
      %v339 = vmax.f32 %v289, 0.0
      %v340 = vmax.f32 %v292, 0.0
      %v341 = vmax.f32 %v297, 0.0
      %v342 = vmax.f32 %v300, 0.0
      %v343 = vmax.f32 %v305, 0.0
      %v344 = vmax.f32 %v308, 0.0
      %v345 = vmax.f32 %v313, 0.0
      %v346 = vmax.f32 %v316, 0.0
      %v347 = vmax.f32 %v321, 0.0
      %v348 = vmax.f32 %v324, 0.0
      %v349 = vmax.f32 %v329, 0.0
      %v350 = vmax.f32 %v332, 0.0
      %v351 = vpack.c.bf16 %v336, %v335
      %v352 = vpack.c.bf16 %v338, %v337
      %v353 = vpack.c.bf16 %v340, %v339
      %v354 = vpack.c.bf16 %v342, %v341
      %v355 = vpack.c.bf16 %v344, %v343
      %v356 = vpack.c.bf16 %v346, %v345
      %v357 = vpack.c.bf16 %v348, %v347
      %v358 = vpack.c.bf16 %v350, %v349
      %v359 = vld [vmem:[#allocation9] sm:$0xf]
      %v360 = vld [vmem:[#allocation9 + $0x4] sm:$0xf]
      %v361 = vld [vmem:[#allocation9 + $0x8] sm:$0xf]
      %v362 = vld [vmem:[#allocation9 + $0xc] sm:$0xf]
      %v363 = vld [vmem:[#allocation9 + $0x10] sm:$0xf]
      %v364 = vld [vmem:[#allocation9 + $0x14] sm:$0xf]
      %v365 = vld [vmem:[#allocation9 + $0x18] sm:$0xf]
      %v366 = vld [vmem:[#allocation9 + $0x1c] sm:$0xf]
      %v367 = vld [vmem:[#allocation9 + $0x20] sm:$0xf]
      %v368 = vld [vmem:[#allocation9 + $0x24] sm:$0xf]
      %v369 = vld [vmem:[#allocation9 + $0x28] sm:$0xf]
      %v370 = vld [vmem:[#allocation9 + $0x2c] sm:$0xf]
      %v371 = vld [vmem:[#allocation9 + $0x30] sm:$0xf]
      %v372 = vld [vmem:[#allocation9 + $0x34] sm:$0xf]
      %v373 = vld [vmem:[#allocation9 + $0x38] sm:$0xf]
      %v374 = vld [vmem:[#allocation9 + $0x3c] sm:$0xf]
      %v375 = vld [vmem:[%s5] sm:$0x1]
      %v377 = vlaneseq
      %v378 = vshrl.u32 %v377, 7
      %v379 = vsub.s32 0, %v378
      %v380 = vrot.slane %v375, %v379
      %v398 = vunpack.c.l.b16 %v359
      %v399 = vunpack.c.l.b16 %v360
      %v400 = vunpack.c.l.b16 %v361
      %v401 = vunpack.c.l.b16 %v362
      %v402 = vunpack.c.l.b16 %v363
      %v403 = vunpack.c.l.b16 %v364
      %v404 = vunpack.c.l.b16 %v365
      %v405 = vunpack.c.l.b16 %v366
      %v406 = vunpack.c.l.b16 %v367
      %v407 = vunpack.c.l.b16 %v368
      %v408 = vunpack.c.l.b16 %v369
      %v409 = vunpack.c.l.b16 %v370
      %v410 = vunpack.c.l.b16 %v371
      %v411 = vunpack.c.l.b16 %v372
      %v412 = vunpack.c.l.b16 %v373
      %v413 = vunpack.c.l.b16 %v374
      %v414 = vpack.c.b16 %v399, %v398
      %v415 = vpack.c.b16 %v401, %v400
      %v416 = vpack.c.b16 %v403, %v402
      %v417 = vpack.c.b16 %v405, %v404
      %v418 = vpack.c.b16 %v407, %v406
      %v419 = vpack.c.b16 %v409, %v408
      %v420 = vpack.c.b16 %v411, %v410
      %v421 = vpack.c.b16 %v413, %v412
      %430 = vmatprep.subr.bf16.mxu0 0
      %431 = vmatpush1.bf16.msra.mxu0 %v414
      %432 = vmatprep.subr.bf16.mxu0 0
      %433 = vmatpush1.bf16.msra.mxu0 %v415
      %434 = vmatprep.subr.bf16.mxu0 0
      %435 = vmatpush1.bf16.msra.mxu0 %v416
      %436 = vmatprep.subr.bf16.mxu0 0
      %437 = vmatpush1.bf16.msra.mxu0 %v417
      %438 = vmatprep.subr.bf16.mxu0 0
      %439 = vmatpush1.bf16.msra.mxu0 %v418
      %440 = vmatprep.subr.bf16.mxu0 0
      %441 = vmatpush1.bf16.msra.mxu0 %v419
      %442 = vmatprep.subr.bf16.mxu0 0
      %443 = vmatpush1.bf16.msra.mxu0 %v420
      %444 = vmatprep.subr.bf16.mxu0 0
      %445 = vmatpush1.bf16.msra.mxu0 %v421
      %446 = vmatprep.subr.bf16.mxu0 0
      %447 = vmatpush1.bf16.msra.mxu0 0
      %448 = vmatprep.subr.bf16.mxu0 0
      %449 = vmatpush1.bf16.msra.mxu0 0
      %450 = vmatprep.subr.bf16.mxu0 0
      %451 = vmatpush1.bf16.msra.mxu0 0
      %452 = vmatprep.subr.bf16.mxu0 0
      %453 = vmatpush1.bf16.msra.mxu0 0
      %454 = vmatprep.subr.bf16.mxu0 0
      %455 = vmatpush1.bf16.msra.mxu0 0
      %456 = vmatprep.subr.bf16.mxu0 0
      %457 = vmatpush1.bf16.msra.mxu0 0
      %458 = vmatprep.subr.bf16.mxu0 0
      %459 = vmatpush1.bf16.msra.mxu0 0
      %460 = vmatprep.subr.bf16.mxu0 0
      %461 = vmatpush1.bf16.msra.mxu0 0
      %462 = vmatprep.mubr.bf16.mxu0 0
      %463 = vmatmul.mubr.bf16.gmra.mrb[0].mxu0 %v351
      %v464 = vpop.f32.mrb[0].mxu0
      %v465 = vadd.f32 %v380, %v464
      %v466 = vpop.f32.mrb[0].mxu0
      %v467 = vpop.f32.mrb[0].mxu0
      %v468 = vadd.f32 %v380, %v467
      %v469 = vpop.f32.mrb[0].mxu0
      %470 = vmatprep.mubr.bf16.mxu0 0
      %471 = vmatmul.mubr.bf16.gmra.mrb[0].mxu0 %v352
      %v472 = vpop.f32.mrb[0].mxu0
      %v473 = vadd.f32 %v380, %v472
      %v474 = vpop.f32.mrb[0].mxu0
      %v475 = vpop.f32.mrb[0].mxu0
      %v476 = vadd.f32 %v380, %v475
      %v477 = vpop.f32.mrb[0].mxu0
      %478 = vmatprep.mubr.bf16.mxu0 0
      %479 = vmatmul.mubr.bf16.gmra.mrb[0].mxu0 %v353
      %v480 = vpop.f32.mrb[0].mxu0
      %v481 = vadd.f32 %v380, %v480
      %v482 = vpop.f32.mrb[0].mxu0
      %v483 = vpop.f32.mrb[0].mxu0
      %v484 = vadd.f32 %v380, %v483
      %v485 = vpop.f32.mrb[0].mxu0
      %486 = vmatprep.mubr.bf16.mxu0 0
      %487 = vmatmul.mubr.bf16.gmra.mrb[0].mxu0 %v354
      %v488 = vpop.f32.mrb[0].mxu0
      %v489 = vadd.f32 %v380, %v488
      %v490 = vpop.f32.mrb[0].mxu0
      %v491 = vpop.f32.mrb[0].mxu0
      %v492 = vadd.f32 %v380, %v491
      %v493 = vpop.f32.mrb[0].mxu0
      %494 = vmatprep.mubr.bf16.mxu0 0
      %495 = vmatmul.mubr.bf16.gmra.mrb[0].mxu0 %v355
      %v496 = vpop.f32.mrb[0].mxu0
      %v497 = vadd.f32 %v380, %v496
      %v498 = vpop.f32.mrb[0].mxu0
      %v499 = vpop.f32.mrb[0].mxu0
      %v500 = vadd.f32 %v380, %v499
      %v501 = vpop.f32.mrb[0].mxu0
      %502 = vmatprep.mubr.bf16.mxu0 0
      %503 = vmatmul.mubr.bf16.gmra.mrb[0].mxu0 %v356
      %v504 = vpop.f32.mrb[0].mxu0
      %v505 = vadd.f32 %v380, %v504
      %v506 = vpop.f32.mrb[0].mxu0
      %v507 = vpop.f32.mrb[0].mxu0
      %v508 = vadd.f32 %v380, %v507
      %v509 = vpop.f32.mrb[0].mxu0
      %510 = vmatprep.mubr.bf16.mxu0 0
      %511 = vmatmul.mubr.bf16.gmra.mrb[0].mxu0 %v357
      %v512 = vpop.f32.mrb[0].mxu0
      %v513 = vadd.f32 %v380, %v512
      %v514 = vpop.f32.mrb[0].mxu0
      %v515 = vpop.f32.mrb[0].mxu0
      %v516 = vadd.f32 %v380, %v515
      %v517 = vpop.f32.mrb[0].mxu0
      %518 = vmatprep.mubr.bf16.mxu0 0
      %519 = vmatmul.mubr.bf16.gmra.mrb[0].mxu0 %v358
      %v520 = vpop.f32.mrb[0].mxu0
      %v521 = vadd.f32 %v380, %v520
      %v522 = vpop.f32.mrb[0].mxu0
      %v523 = vpop.f32.mrb[0].mxu0
      %v524 = vadd.f32 %v380, %v523
      %v525 = vpop.f32.mrb[0].mxu0
      %526 = vdwg.mxu0
      %v527 = vpack.c.bf16 %v468, %v465
      %v528 = vpack.c.bf16 %v476, %v473
      %v529 = vpack.c.bf16 %v484, %v481
      %v530 = vpack.c.bf16 %v492, %v489
      %v531 = vpack.c.bf16 %v500, %v497
      %v532 = vpack.c.bf16 %v508, %v505
      %v533 = vpack.c.bf16 %v516, %v513
      %v534 = vpack.c.bf16 %v524, %v521
      %535 = vst [vmem:[#allocation2] sm:$0xff] %v527
      %536 = vst [vmem:[#allocation2 + $0x8] sm:$0xff] %v528
      %537 = vst [vmem:[#allocation2 + $0x10] sm:$0xff] %v529
      %538 = vst [vmem:[#allocation2 + $0x18] sm:$0xff] %v530
      %539 = vst [vmem:[#allocation2 + $0x20] sm:$0xff] %v531
      %540 = vst [vmem:[#allocation2 + $0x28] sm:$0xff] %v532
      %541 = vst [vmem:[#allocation2 + $0x30] sm:$0xff] %v533
      %542 = vst [vmem:[#allocation2 + $0x38] sm:$0xff] %v534
    $region57: #{tpu_custom_call.1} parent=1 // pred_fallthru
      _
    %v543 = vld [vmem:[#allocation6] sm:$0xf]
    %v544 = vld [vmem:[#allocation6 + $0x4] sm:$0xf]
    %v545 = vld [vmem:[#allocation6 + $0x8] sm:$0xf]
    %v546 = vld [vmem:[#allocation6 + $0xc] sm:$0xf]
    %v547 = vld [vmem:[#allocation6 + $0x10] sm:$0xf]
    %v548 = vld [vmem:[#allocation6 + $0x14] sm:$0xf]
    %v549 = vld [vmem:[#allocation6 + $0x18] sm:$0xf]
    %v550 = vld [vmem:[#allocation6 + $0x1c] sm:$0xf]
    %v551 = vld [vmem:[#allocation6 + $0x20] sm:$0xf]
    %v552 = vld [vmem:[#allocation6 + $0x24] sm:$0xf]
    %v553 = vld [vmem:[#allocation6 + $0x28] sm:$0xf]
    %v554 = vld [vmem:[#allocation6 + $0x2c] sm:$0xf]
    %v555 = vld [vmem:[#allocation6 + $0x30] sm:$0xf]
    %v556 = vld [vmem:[#allocation6 + $0x34] sm:$0xf]
    %v557 = vld [vmem:[#allocation6 + $0x38] sm:$0xf]
    %v558 = vld [vmem:[#allocation6 + $0x3c] sm:$0xf]
    %v559 = vld [vmem:[#allocation8] sm:$0xf]
    %v560 = vld [vmem:[#allocation8 + $0x4] sm:$0xf]
    %v561 = vld [vmem:[#allocation8 + $0x8] sm:$0xf]
    %v562 = vld [vmem:[#allocation8 + $0xc] sm:$0xf]
    %v563 = vld [vmem:[#allocation8 + $0x10] sm:$0xf]
    %v564 = vld [vmem:[#allocation8 + $0x14] sm:$0xf]
    %v565 = vld [vmem:[#allocation8 + $0x18] sm:$0xf]
    %v566 = vld [vmem:[#allocation8 + $0x1c] sm:$0xf]
    %v567 = vld [vmem:[#allocation8 + $0x20] sm:$0xf]
    %v568 = vld [vmem:[#allocation8 + $0x24] sm:$0xf]
    %v569 = vld [vmem:[#allocation8 + $0x28] sm:$0xf]
    %v570 = vld [vmem:[#allocation8 + $0x2c] sm:$0xf]
    %v571 = vld [vmem:[#allocation8 + $0x30] sm:$0xf]
    %v572 = vld [vmem:[#allocation8 + $0x34] sm:$0xf]
    %v573 = vld [vmem:[#allocation8 + $0x38] sm:$0xf]
    %v574 = vld [vmem:[#allocation8 + $0x3c] sm:$0xf]
    %v575 = vld [vmem:[%s3] sm:$0x1]
    %v577 = vlaneseq
    %v578 = vshrl.u32 %v577, 7
    %v579 = vsub.s32 0, %v578
    %v580 = vrot.slane %v575, %v579
    %v598 = vunpack.c.l.b16 %v543
    %v599 = vunpack.c.l.b16 %v544
    %v600 = vunpack.c.l.b16 %v545
    %v601 = vunpack.c.l.b16 %v546
    %v602 = vunpack.c.l.b16 %v547
    %v603 = vunpack.c.l.b16 %v548
    %v604 = vunpack.c.l.b16 %v549
    %v605 = vunpack.c.l.b16 %v550
    %v606 = vunpack.c.l.b16 %v551
    %v607 = vunpack.c.l.b16 %v552
    %v608 = vunpack.c.l.b16 %v553
    %v609 = vunpack.c.l.b16 %v554
    %v610 = vunpack.c.l.b16 %v555
    %v611 = vunpack.c.l.b16 %v556
    %v612 = vunpack.c.l.b16 %v557
    %v613 = vunpack.c.l.b16 %v558
    %v614 = vpack.c.b16 %v599, %v598
    %v615 = vpack.c.b16 %v601, %v600
    %v616 = vpack.c.b16 %v603, %v602
    %v617 = vpack.c.b16 %v605, %v604
    %v618 = vpack.c.b16 %v607, %v606
    %v619 = vpack.c.b16 %v609, %v608
    %v620 = vpack.c.b16 %v611, %v610
    %v621 = vpack.c.b16 %v613, %v612
    %v646 = vunpack.c.l.b16 %v559
    %v647 = vunpack.c.l.b16 %v560
    %v648 = vunpack.c.l.b16 %v561
    %v649 = vunpack.c.l.b16 %v562
    %v650 = vunpack.c.l.b16 %v563
    %v651 = vunpack.c.l.b16 %v564
    %v652 = vunpack.c.l.b16 %v565
    %v653 = vunpack.c.l.b16 %v566
    %v654 = vunpack.c.l.b16 %v567
    %v655 = vunpack.c.l.b16 %v568
    %v656 = vunpack.c.l.b16 %v569
    %v657 = vunpack.c.l.b16 %v570
    %v658 = vunpack.c.l.b16 %v571
    %v659 = vunpack.c.l.b16 %v572
    %v660 = vunpack.c.l.b16 %v573
    %v661 = vunpack.c.l.b16 %v574
    %v662 = vpack.c.b16 %v647, %v646
    %v663 = vpack.c.b16 %v649, %v648
    %v664 = vpack.c.b16 %v651, %v650
    %v665 = vpack.c.b16 %v653, %v652
    %v666 = vpack.c.b16 %v655, %v654
    %v667 = vpack.c.b16 %v657, %v656
    %v668 = vpack.c.b16 %v659, %v658
    %v669 = vpack.c.b16 %v661, %v660
    %678 = vmatprep.subr.bf16.mxu0 0
    %679 = vmatpush1.bf16.msra.mxu0 %v662
    %680 = vmatprep.subr.bf16.mxu0 0
    %681 = vmatpush1.bf16.msra.mxu0 %v663
    %682 = vmatprep.subr.bf16.mxu0 0
    %683 = vmatpush1.bf16.msra.mxu0 %v664
    %684 = vmatprep.subr.bf16.mxu0 0
    %685 = vmatpush1.bf16.msra.mxu0 %v665
    %686 = vmatprep.subr.bf16.mxu0 0
    %687 = vmatpush1.bf16.msra.mxu0 %v666
    %688 = vmatprep.subr.bf16.mxu0 0
    %689 = vmatpush1.bf16.msra.mxu0 %v667
    %690 = vmatprep.subr.bf16.mxu0 0
    %691 = vmatpush1.bf16.msra.mxu0 %v668
    %692 = vmatprep.subr.bf16.mxu0 0
    %693 = vmatpush1.bf16.msra.mxu0 %v669
    %694 = vmatprep.subr.bf16.mxu0 0
    %695 = vmatpush1.bf16.msra.mxu0 0
    %696 = vmatprep.subr.bf16.mxu0 0
    %697 = vmatpush1.bf16.msra.mxu0 0
    %698 = vmatprep.subr.bf16.mxu0 0
    %699 = vmatpush1.bf16.msra.mxu0 0
    %700 = vmatprep.subr.bf16.mxu0 0
    %701 = vmatpush1.bf16.msra.mxu0 0
    %702 = vmatprep.subr.bf16.mxu0 0
    %703 = vmatpush1.bf16.msra.mxu0 0
    %704 = vmatprep.subr.bf16.mxu0 0
    %705 = vmatpush1.bf16.msra.mxu0 0
    %706 = vmatprep.subr.bf16.mxu0 0
    %707 = vmatpush1.bf16.msra.mxu0 0
    %708 = vmatprep.subr.bf16.mxu0 0
    %709 = vmatpush1.bf16.msra.mxu0 0
    %710 = vmatprep.mubr.bf16.mxu0 0
    %711 = vmatmul.mubr.bf16.gmra.mrb[0].mxu0 %v614
    %v712 = vpop.f32.mrb[0].mxu0
    %v713 = vadd.f32 %v580, %v712
    %v714 = vpop.f32.mrb[0].mxu0
    %v715 = vpop.f32.mrb[0].mxu0
    %v716 = vadd.f32 %v580, %v715
    %v717 = vpop.f32.mrb[0].mxu0
    %718 = vmatprep.mubr.bf16.mxu0 0
    %719 = vmatmul.mubr.bf16.gmra.mrb[0].mxu0 %v615
    %v720 = vpop.f32.mrb[0].mxu0
    %v721 = vadd.f32 %v580, %v720
    %v722 = vpop.f32.mrb[0].mxu0
    %v723 = vpop.f32.mrb[0].mxu0
    %v724 = vadd.f32 %v580, %v723
    %v725 = vpop.f32.mrb[0].mxu0
    %726 = vmatprep.mubr.bf16.mxu0 0
    %727 = vmatmul.mubr.bf16.gmra.mrb[0].mxu0 %v616
    %v728 = vpop.f32.mrb[0].mxu0
    %v729 = vadd.f32 %v580, %v728
    %v730 = vpop.f32.mrb[0].mxu0
    %v731 = vpop.f32.mrb[0].mxu0
    %v732 = vadd.f32 %v580, %v731
    %v733 = vpop.f32.mrb[0].mxu0
    %734 = vmatprep.mubr.bf16.mxu0 0
    %735 = vmatmul.mubr.bf16.gmra.mrb[0].mxu0 %v617
    %v736 = vpop.f32.mrb[0].mxu0
    %v737 = vadd.f32 %v580, %v736
    %v738 = vpop.f32.mrb[0].mxu0
    %v739 = vpop.f32.mrb[0].mxu0
    %v740 = vadd.f32 %v580, %v739
    %v741 = vpop.f32.mrb[0].mxu0
    %742 = vmatprep.mubr.bf16.mxu0 0
    %743 = vmatmul.mubr.bf16.gmra.mrb[0].mxu0 %v618
    %v744 = vpop.f32.mrb[0].mxu0
    %v745 = vadd.f32 %v580, %v744
    %v746 = vpop.f32.mrb[0].mxu0
    %v747 = vpop.f32.mrb[0].mxu0
    %v748 = vadd.f32 %v580, %v747
    %v749 = vpop.f32.mrb[0].mxu0
    %750 = vmatprep.mubr.bf16.mxu0 0
    %751 = vmatmul.mubr.bf16.gmra.mrb[0].mxu0 %v619
    %v752 = vpop.f32.mrb[0].mxu0
    %v753 = vadd.f32 %v580, %v752
    %v754 = vpop.f32.mrb[0].mxu0
    %v755 = vpop.f32.mrb[0].mxu0
    %v756 = vadd.f32 %v580, %v755
    %v757 = vpop.f32.mrb[0].mxu0
    %758 = vmatprep.mubr.bf16.mxu0 0
    %759 = vmatmul.mubr.bf16.gmra.mrb[0].mxu0 %v620
    %v760 = vpop.f32.mrb[0].mxu0
    %v761 = vadd.f32 %v580, %v760
    %v762 = vpop.f32.mrb[0].mxu0
    %v763 = vpop.f32.mrb[0].mxu0
    %v764 = vadd.f32 %v580, %v763
    %v765 = vpop.f32.mrb[0].mxu0
    %766 = vmatprep.mubr.bf16.mxu0 0
    %767 = vmatmul.mubr.bf16.gmra.mrb[0].mxu0 %v621
    %v768 = vpop.f32.mrb[0].mxu0
    %v769 = vadd.f32 %v580, %v768
    %v770 = vpop.f32.mrb[0].mxu0
    %v771 = vpop.f32.mrb[0].mxu0
    %v772 = vadd.f32 %v580, %v771
    %v773 = vpop.f32.mrb[0].mxu0
    %774 = vdwg.mxu0
    %v775 = vmax.f32 %v713, 0.0
    %v776 = vmax.f32 %v716, 0.0
    %v777 = vmax.f32 %v721, 0.0
    %v778 = vmax.f32 %v724, 0.0
    %v779 = vmax.f32 %v729, 0.0
    %v780 = vmax.f32 %v732, 0.0
    %v781 = vmax.f32 %v737, 0.0
    %v782 = vmax.f32 %v740, 0.0
    %v783 = vmax.f32 %v745, 0.0
    %v784 = vmax.f32 %v748, 0.0
    %v785 = vmax.f32 %v753, 0.0
    %v786 = vmax.f32 %v756, 0.0
    %v787 = vmax.f32 %v761, 0.0
    %v788 = vmax.f32 %v764, 0.0
    %v789 = vmax.f32 %v769, 0.0
    %v790 = vmax.f32 %v772, 0.0
    %v791 = vpack.c.bf16 %v776, %v775
    %v792 = vpack.c.bf16 %v778, %v777
    %v793 = vpack.c.bf16 %v780, %v779
    %v794 = vpack.c.bf16 %v782, %v781
    %v795 = vpack.c.bf16 %v784, %v783
    %v796 = vpack.c.bf16 %v786, %v785
    %v797 = vpack.c.bf16 %v788, %v787
    %v798 = vpack.c.bf16 %v790, %v789
    %v799 = vld [vmem:[#allocation11] sm:$0xf]
    %v800 = vld [vmem:[#allocation11 + $0x4] sm:$0xf]
    %v801 = vld [vmem:[#allocation11 + $0x8] sm:$0xf]
    %v802 = vld [vmem:[#allocation11 + $0xc] sm:$0xf]
    %v803 = vld [vmem:[#allocation11 + $0x10] sm:$0xf]
    %v804 = vld [vmem:[#allocation11 + $0x14] sm:$0xf]
    %v805 = vld [vmem:[#allocation11 + $0x18] sm:$0xf]
    %v806 = vld [vmem:[#allocation11 + $0x1c] sm:$0xf]
    %v807 = vld [vmem:[#allocation11 + $0x20] sm:$0xf]
    %v808 = vld [vmem:[#allocation11 + $0x24] sm:$0xf]
    %v809 = vld [vmem:[#allocation11 + $0x28] sm:$0xf]
    %v810 = vld [vmem:[#allocation11 + $0x2c] sm:$0xf]
    %v811 = vld [vmem:[#allocation11 + $0x30] sm:$0xf]
    %v812 = vld [vmem:[#allocation11 + $0x34] sm:$0xf]
    %v813 = vld [vmem:[#allocation11 + $0x38] sm:$0xf]
    %v814 = vld [vmem:[#allocation11 + $0x3c] sm:$0xf]
    %v815 = vld [vmem:[%s7] sm:$0x1]
    %v817 = vlaneseq
    %v818 = vshrl.u32 %v817, 7
    %v819 = vsub.s32 0, %v818
    %v820 = vrot.slane %v815, %v819
    %v838 = vunpack.c.l.b16 %v799
    %v839 = vunpack.c.l.b16 %v800
    %v840 = vunpack.c.l.b16 %v801
    %v841 = vunpack.c.l.b16 %v802
    %v842 = vunpack.c.l.b16 %v803
    %v843 = vunpack.c.l.b16 %v804
    %v844 = vunpack.c.l.b16 %v805
    %v845 = vunpack.c.l.b16 %v806
    %v846 = vunpack.c.l.b16 %v807
    %v847 = vunpack.c.l.b16 %v808
    %v848 = vunpack.c.l.b16 %v809
    %v849 = vunpack.c.l.b16 %v810
    %v850 = vunpack.c.l.b16 %v811
    %v851 = vunpack.c.l.b16 %v812
    %v852 = vunpack.c.l.b16 %v813
    %v853 = vunpack.c.l.b16 %v814
    %v854 = vpack.c.b16 %v839, %v838
    %v855 = vpack.c.b16 %v841, %v840
    %v856 = vpack.c.b16 %v843, %v842
    %v857 = vpack.c.b16 %v845, %v844
    %v858 = vpack.c.b16 %v847, %v846
    %v859 = vpack.c.b16 %v849, %v848
    %v860 = vpack.c.b16 %v851, %v850
    %v861 = vpack.c.b16 %v853, %v852
    %870 = vmatprep.subr.bf16.mxu0 0
    %871 = vmatpush1.bf16.msra.mxu0 %v854
    %872 = vmatprep.subr.bf16.mxu0 0
    %873 = vmatpush1.bf16.msra.mxu0 %v855
    %874 = vmatprep.subr.bf16.mxu0 0
    %875 = vmatpush1.bf16.msra.mxu0 %v856
    %876 = vmatprep.subr.bf16.mxu0 0
    %877 = vmatpush1.bf16.msra.mxu0 %v857
    %878 = vmatprep.subr.bf16.mxu0 0
    %879 = vmatpush1.bf16.msra.mxu0 %v858
    %880 = vmatprep.subr.bf16.mxu0 0
    %881 = vmatpush1.bf16.msra.mxu0 %v859
    %882 = vmatprep.subr.bf16.mxu0 0
    %883 = vmatpush1.bf16.msra.mxu0 %v860
    %884 = vmatprep.subr.bf16.mxu0 0
    %885 = vmatpush1.bf16.msra.mxu0 %v861
    %886 = vmatprep.subr.bf16.mxu0 0
    %887 = vmatpush1.bf16.msra.mxu0 0
    %888 = vmatprep.subr.bf16.mxu0 0
    %889 = vmatpush1.bf16.msra.mxu0 0
    %890 = vmatprep.subr.bf16.mxu0 0
    %891 = vmatpush1.bf16.msra.mxu0 0
    %892 = vmatprep.subr.bf16.mxu0 0
    %893 = vmatpush1.bf16.msra.mxu0 0
    %894 = vmatprep.subr.bf16.mxu0 0
    %895 = vmatpush1.bf16.msra.mxu0 0
    %896 = vmatprep.subr.bf16.mxu0 0
    %897 = vmatpush1.bf16.msra.mxu0 0
    %898 = vmatprep.subr.bf16.mxu0 0
    %899 = vmatpush1.bf16.msra.mxu0 0
    %900 = vmatprep.subr.bf16.mxu0 0
    %901 = vmatpush1.bf16.msra.mxu0 0
    %902 = vmatprep.mubr.bf16.mxu0 0
    %903 = vmatmul.mubr.bf16.gmra.mrb[0].mxu0 %v791
    %v904 = vpop.f32.mrb[0].mxu0
    %v905 = vadd.f32 %v820, %v904
    %v906 = vpop.f32.mrb[0].mxu0
    %v907 = vpop.f32.mrb[0].mxu0
    %v908 = vadd.f32 %v820, %v907
    %v909 = vpop.f32.mrb[0].mxu0
    %910 = vmatprep.mubr.bf16.mxu0 0
    %911 = vmatmul.mubr.bf16.gmra.mrb[0].mxu0 %v792
    %v912 = vpop.f32.mrb[0].mxu0
    %v913 = vadd.f32 %v820, %v912
    %v914 = vpop.f32.mrb[0].mxu0
    %v915 = vpop.f32.mrb[0].mxu0
    %v916 = vadd.f32 %v820, %v915
    %v917 = vpop.f32.mrb[0].mxu0
    %918 = vmatprep.mubr.bf16.mxu0 0
    %919 = vmatmul.mubr.bf16.gmra.mrb[0].mxu0 %v793
    %v920 = vpop.f32.mrb[0].mxu0
    %v921 = vadd.f32 %v820, %v920
    %v922 = vpop.f32.mrb[0].mxu0
    %v923 = vpop.f32.mrb[0].mxu0
    %v924 = vadd.f32 %v820, %v923
    %v925 = vpop.f32.mrb[0].mxu0
    %926 = vmatprep.mubr.bf16.mxu0 0
    %927 = vmatmul.mubr.bf16.gmra.mrb[0].mxu0 %v794
    %v928 = vpop.f32.mrb[0].mxu0
    %v929 = vadd.f32 %v820, %v928
    %v930 = vpop.f32.mrb[0].mxu0
    %v931 = vpop.f32.mrb[0].mxu0
    %v932 = vadd.f32 %v820, %v931
    %v933 = vpop.f32.mrb[0].mxu0
    %934 = vmatprep.mubr.bf16.mxu0 0
    %935 = vmatmul.mubr.bf16.gmra.mrb[0].mxu0 %v795
    %v936 = vpop.f32.mrb[0].mxu0
    %v937 = vadd.f32 %v820, %v936
    %v938 = vpop.f32.mrb[0].mxu0
    %v939 = vpop.f32.mrb[0].mxu0
    %v940 = vadd.f32 %v820, %v939
    %v941 = vpop.f32.mrb[0].mxu0
    %942 = vmatprep.mubr.bf16.mxu0 0
    %943 = vmatmul.mubr.bf16.gmra.mrb[0].mxu0 %v796
    %v944 = vpop.f32.mrb[0].mxu0
    %v945 = vadd.f32 %v820, %v944
    %v946 = vpop.f32.mrb[0].mxu0
    %v947 = vpop.f32.mrb[0].mxu0
    %v948 = vadd.f32 %v820, %v947
    %v949 = vpop.f32.mrb[0].mxu0
    %950 = vmatprep.mubr.bf16.mxu0 0
    %951 = vmatmul.mubr.bf16.gmra.mrb[0].mxu0 %v797
    %v952 = vpop.f32.mrb[0].mxu0
    %v953 = vadd.f32 %v820, %v952
    %v954 = vpop.f32.mrb[0].mxu0
    %v955 = vpop.f32.mrb[0].mxu0
    %v956 = vadd.f32 %v820, %v955
    %v957 = vpop.f32.mrb[0].mxu0
    %958 = vmatprep.mubr.bf16.mxu0 0
    %959 = vmatmul.mubr.bf16.gmra.mrb[0].mxu0 %v798
    %v960 = vpop.f32.mrb[0].mxu0
    %v961 = vadd.f32 %v820, %v960
    %v962 = vpop.f32.mrb[0].mxu0
    %v963 = vpop.f32.mrb[0].mxu0
    %v964 = vadd.f32 %v820, %v963
    %v965 = vpop.f32.mrb[0].mxu0
    %966 = vdwg.mxu0
    %v967 = vpack.c.bf16 %v908, %v905
    %v968 = vpack.c.bf16 %v916, %v913
    %v969 = vpack.c.bf16 %v924, %v921
    %v970 = vpack.c.bf16 %v932, %v929
    %v971 = vpack.c.bf16 %v940, %v937
    %v972 = vpack.c.bf16 %v948, %v945
    %v973 = vpack.c.bf16 %v956, %v953
    %v974 = vpack.c.bf16 %v964, %v961
    %v975 = vld [vmem:[#allocation2] sm:$0xff]
    %v976 = vld [vmem:[#allocation2 + $0x8] sm:$0xff]
    %v977 = vld [vmem:[#allocation2 + $0x10] sm:$0xff]
    %v978 = vld [vmem:[#allocation2 + $0x18] sm:$0xff]
    %v979 = vld [vmem:[#allocation2 + $0x20] sm:$0xff]
    %v980 = vld [vmem:[#allocation2 + $0x28] sm:$0xff]
    %v981 = vld [vmem:[#allocation2 + $0x30] sm:$0xff]
    %v982 = vld [vmem:[#allocation2 + $0x38] sm:$0xff]
    %983 = vmatprep.subr.bf16.mxu0 0
    %984 = vmatpush1.bf16.xpose.msra.mxu0 %v967
    %985 = vmatprep.subr.bf16.mxu0 0
    %986 = vmatpush1.bf16.xpose.msra.mxu0 %v968
    %987 = vmatprep.subr.bf16.mxu0 0
    %988 = vmatpush1.bf16.xpose.msra.mxu0 %v969
    %989 = vmatprep.subr.bf16.mxu0 0
    %990 = vmatpush1.bf16.xpose.msra.mxu0 %v970
    %991 = vmatprep.subr.bf16.mxu0 0
    %992 = vmatpush1.bf16.xpose.msra.mxu0 %v971
    %993 = vmatprep.subr.bf16.mxu0 0
    %994 = vmatpush1.bf16.xpose.msra.mxu0 %v972
    %995 = vmatprep.subr.bf16.mxu0 0
    %996 = vmatpush1.bf16.xpose.msra.mxu0 %v973
    %997 = vmatprep.subr.bf16.mxu0 0
    %998 = vmatpush1.bf16.xpose.msra.mxu0 %v974
    %999 = vmatprep.subr.bf16.mxu0 0
    %1000 = vmatpush1.bf16.xpose.msra.mxu0 0
    %1001 = vmatprep.subr.bf16.mxu0 0
    %1002 = vmatpush1.bf16.xpose.msra.mxu0 0
    %1003 = vmatprep.subr.bf16.mxu0 0
    %1004 = vmatpush1.bf16.xpose.msra.mxu0 0
    %1005 = vmatprep.subr.bf16.mxu0 0
    %1006 = vmatpush1.bf16.xpose.msra.mxu0 0
    %1007 = vmatprep.subr.bf16.mxu0 0
    %1008 = vmatpush1.bf16.xpose.msra.mxu0 0
    %1009 = vmatprep.subr.bf16.mxu0 0
    %1010 = vmatpush1.bf16.xpose.msra.mxu0 0
    %1011 = vmatprep.subr.bf16.mxu0 0
    %1012 = vmatpush1.bf16.xpose.msra.mxu0 0
    %1013 = vmatprep.subr.bf16.mxu0 0
    %1014 = vmatpush1.bf16.xpose.msra.mxu0 0
    %1015 = vmatprep.mubr.bf16.mxu0 0
    %1016 = vmatmul.mubr.bf16.gmra.mrb[0].mxu0 %v975
    %v1017 = vpop.f32.mrb[0].mxu0
    %v1018 = vadd.f32 0.0, %v1017
    %v1019 = vpop.f32.mrb[0].mxu0
    %v1020 = vpop.f32.mrb[0].mxu0
    %v1021 = vadd.f32 0.0, %v1020
    %v1022 = vpop.f32.mrb[0].mxu0
    %1023 = vmatprep.mubr.bf16.mxu0 0
    %1024 = vmatmul.mubr.bf16.gmra.mrb[0].mxu0 %v976
    %v1025 = vpop.f32.mrb[0].mxu0
    %v1026 = vadd.f32 0.0, %v1025
    %v1027 = vpop.f32.mrb[0].mxu0
    %v1028 = vpop.f32.mrb[0].mxu0
    %v1029 = vadd.f32 0.0, %v1028
    %v1030 = vpop.f32.mrb[0].mxu0
    %1031 = vmatprep.mubr.bf16.mxu0 0
    %1032 = vmatmul.mubr.bf16.gmra.mrb[0].mxu0 %v977
    %v1033 = vpop.f32.mrb[0].mxu0
    %v1034 = vadd.f32 0.0, %v1033
    %v1035 = vpop.f32.mrb[0].mxu0
    %v1036 = vpop.f32.mrb[0].mxu0
    %v1037 = vadd.f32 0.0, %v1036
    %v1038 = vpop.f32.mrb[0].mxu0
    %1039 = vmatprep.mubr.bf16.mxu0 0
    %1040 = vmatmul.mubr.bf16.gmra.mrb[0].mxu0 %v978
    %v1041 = vpop.f32.mrb[0].mxu0
    %v1042 = vadd.f32 0.0, %v1041
    %v1043 = vpop.f32.mrb[0].mxu0
    %v1044 = vpop.f32.mrb[0].mxu0
    %v1045 = vadd.f32 0.0, %v1044
    %v1046 = vpop.f32.mrb[0].mxu0
    %1047 = vmatprep.mubr.bf16.mxu0 0
    %1048 = vmatmul.mubr.bf16.gmra.mrb[0].mxu0 %v979
    %v1049 = vpop.f32.mrb[0].mxu0
    %v1050 = vadd.f32 0.0, %v1049
    %v1051 = vpop.f32.mrb[0].mxu0
    %v1052 = vpop.f32.mrb[0].mxu0
    %v1053 = vadd.f32 0.0, %v1052
    %v1054 = vpop.f32.mrb[0].mxu0
    %1055 = vmatprep.mubr.bf16.mxu0 0
    %1056 = vmatmul.mubr.bf16.gmra.mrb[0].mxu0 %v980
    %v1057 = vpop.f32.mrb[0].mxu0
    %v1058 = vadd.f32 0.0, %v1057
    %v1059 = vpop.f32.mrb[0].mxu0
    %v1060 = vpop.f32.mrb[0].mxu0
    %v1061 = vadd.f32 0.0, %v1060
    %v1062 = vpop.f32.mrb[0].mxu0
    %1063 = vmatprep.mubr.bf16.mxu0 0
    %1064 = vmatmul.mubr.bf16.gmra.mrb[0].mxu0 %v981
    %v1065 = vpop.f32.mrb[0].mxu0
    %v1066 = vadd.f32 0.0, %v1065
    %v1067 = vpop.f32.mrb[0].mxu0
    %v1068 = vpop.f32.mrb[0].mxu0
    %v1069 = vadd.f32 0.0, %v1068
    %v1070 = vpop.f32.mrb[0].mxu0
    %1071 = vmatprep.mubr.bf16.mxu0 0
    %1072 = vmatmul.mubr.bf16.gmra.mrb[0].mxu0 %v982
    %v1073 = vpop.f32.mrb[0].mxu0
    %v1074 = vadd.f32 0.0, %v1073
    %v1075 = vpop.f32.mrb[0].mxu0
    %v1076 = vpop.f32.mrb[0].mxu0
    %v1077 = vadd.f32 0.0, %v1076
    %v1078 = vpop.f32.mrb[0].mxu0
    %1079 = vdwg.mxu0
    %v1080 = vmul.f32 %v1018, 0.5
    %v1081 = vmul.f32 %v1021, 0.5
    %v1082 = vmul.f32 %v1026, 0.5
    %v1083 = vmul.f32 %v1029, 0.5
    %v1084 = vmul.f32 %v1034, 0.5
    %v1085 = vmul.f32 %v1037, 0.5
    %v1086 = vmul.f32 %v1042, 0.5
    %v1087 = vmul.f32 %v1045, 0.5
    %v1088 = vmul.f32 %v1050, 0.5
    %v1089 = vmul.f32 %v1053, 0.5
    %v1090 = vmul.f32 %v1058, 0.5
    %v1091 = vmul.f32 %v1061, 0.5
    %v1092 = vmul.f32 %v1066, 0.5
    %v1093 = vmul.f32 %v1069, 0.5
    %v1094 = vmul.f32 %v1074, 0.5
    %v1095 = vmul.f32 %v1077, 0.5
    %v1096 = vtanh.pop %v1080
    %v1097 = vtanh.pop %v1081
    %v1098 = vtanh.pop %v1082
    %v1099 = vtanh.pop %v1083
    %v1100 = vtanh.pop %v1084
    %v1101 = vtanh.pop %v1085
    %v1102 = vtanh.pop %v1086
    %v1103 = vtanh.pop %v1087
    %v1104 = vtanh.pop %v1088
    %v1105 = vtanh.pop %v1089
    %v1106 = vtanh.pop %v1090
    %v1107 = vtanh.pop %v1091
    %v1108 = vtanh.pop %v1092
    %v1109 = vtanh.pop %v1093
    %v1110 = vtanh.pop %v1094
    %v1111 = vtanh.pop %v1095
    %v1112 = vmul.f32 %v1096, 0.5
    %v1113 = vmul.f32 %v1097, 0.5
    %v1114 = vmul.f32 %v1098, 0.5
    %v1115 = vmul.f32 %v1099, 0.5
    %v1116 = vmul.f32 %v1100, 0.5
    %v1117 = vmul.f32 %v1101, 0.5
    %v1118 = vmul.f32 %v1102, 0.5
    %v1119 = vmul.f32 %v1103, 0.5
    %v1120 = vmul.f32 %v1104, 0.5
    %v1121 = vmul.f32 %v1105, 0.5
    %v1122 = vmul.f32 %v1106, 0.5
    %v1123 = vmul.f32 %v1107, 0.5
    %v1124 = vmul.f32 %v1108, 0.5
    %v1125 = vmul.f32 %v1109, 0.5
    %v1126 = vmul.f32 %v1110, 0.5
    %v1127 = vmul.f32 %v1111, 0.5
    %v1128 = vadd.f32 %v1112, 0.5
    %v1129 = vadd.f32 %v1113, 0.5
    %v1130 = vadd.f32 %v1114, 0.5
    %v1131 = vadd.f32 %v1115, 0.5
    %v1132 = vadd.f32 %v1116, 0.5
    %v1133 = vadd.f32 %v1117, 0.5
    %v1134 = vadd.f32 %v1118, 0.5
    %v1135 = vadd.f32 %v1119, 0.5
    %v1136 = vadd.f32 %v1120, 0.5
    %v1137 = vadd.f32 %v1121, 0.5
    %v1138 = vadd.f32 %v1122, 0.5
    %v1139 = vadd.f32 %v1123, 0.5
    %v1140 = vadd.f32 %v1124, 0.5
    %v1141 = vadd.f32 %v1125, 0.5
    %v1142 = vadd.f32 %v1126, 0.5
    %v1143 = vadd.f32 %v1127, 0.5
    %v1144 = vpack.c.bf16 %v1129, %v1128
    %v1145 = vpack.c.bf16 %v1131, %v1130
    %v1146 = vpack.c.bf16 %v1133, %v1132
    %v1147 = vpack.c.bf16 %v1135, %v1134
    %v1148 = vpack.c.bf16 %v1137, %v1136
    %v1149 = vpack.c.bf16 %v1139, %v1138
    %v1150 = vpack.c.bf16 %v1141, %v1140
    %v1151 = vpack.c.bf16 %v1143, %v1142
    %v1160 = vunpack.c.l.b16 %v1144
    %v1161 = vunpack.c.h.b16 %v1144
    %v1162 = vunpack.c.l.b16 %v1145
    %v1163 = vunpack.c.h.b16 %v1145
    %v1164 = vunpack.c.l.b16 %v1146
    %v1165 = vunpack.c.h.b16 %v1146
    %v1166 = vunpack.c.l.b16 %v1147
    %v1167 = vunpack.c.h.b16 %v1147
    %v1168 = vunpack.c.l.b16 %v1148
    %v1169 = vunpack.c.h.b16 %v1148
    %v1170 = vunpack.c.l.b16 %v1149
    %v1171 = vunpack.c.h.b16 %v1149
    %v1172 = vunpack.c.l.b16 %v1150
    %v1173 = vunpack.c.h.b16 %v1150
    %v1174 = vunpack.c.l.b16 %v1151
    %v1175 = vunpack.c.h.b16 %v1151
    %v1176 = vpack.c.b16 %v1160, %v1160
    %v1177 = vpack.c.b16 %v1161, %v1161
    %v1178 = vpack.c.b16 %v1162, %v1162
    %v1179 = vpack.c.b16 %v1163, %v1163
    %v1180 = vpack.c.b16 %v1164, %v1164
    %v1181 = vpack.c.b16 %v1165, %v1165
    %v1182 = vpack.c.b16 %v1166, %v1166
    %v1183 = vpack.c.b16 %v1167, %v1167
    %v1184 = vpack.c.b16 %v1168, %v1168
    %v1185 = vpack.c.b16 %v1169, %v1169
    %v1186 = vpack.c.b16 %v1170, %v1170
    %v1187 = vpack.c.b16 %v1171, %v1171
    %v1188 = vpack.c.b16 %v1172, %v1172
    %v1189 = vpack.c.b16 %v1173, %v1173
    %v1190 = vpack.c.b16 %v1174, %v1174
    %v1191 = vpack.c.b16 %v1175, %v1175
    %1208 = vst [vmem:[#allocation12] sm:$0xf] %v1176
    %1209 = vst [vmem:[#allocation12 + $0x4] sm:$0xf] %v1177
    %1210 = vst [vmem:[#allocation12 + $0x8] sm:$0xf] %v1178
    %1211 = vst [vmem:[#allocation12 + $0xc] sm:$0xf] %v1179
    %1212 = vst [vmem:[#allocation12 + $0x10] sm:$0xf] %v1180
    %1213 = vst [vmem:[#allocation12 + $0x14] sm:$0xf] %v1181
    %1214 = vst [vmem:[#allocation12 + $0x18] sm:$0xf] %v1182
    %1215 = vst [vmem:[#allocation12 + $0x1c] sm:$0xf] %v1183
    %1216 = vst [vmem:[#allocation12 + $0x20] sm:$0xf] %v1184
    %1217 = vst [vmem:[#allocation12 + $0x24] sm:$0xf] %v1185
    %1218 = vst [vmem:[#allocation12 + $0x28] sm:$0xf] %v1186
    %1219 = vst [vmem:[#allocation12 + $0x2c] sm:$0xf] %v1187
    %1220 = vst [vmem:[#allocation12 + $0x30] sm:$0xf] %v1188
    %1221 = vst [vmem:[#allocation12 + $0x34] sm:$0xf] %v1189
    %1222 = vst [vmem:[#allocation12 + $0x38] sm:$0xf] %v1190
    %1223 = vst [vmem:[#allocation12 + $0x3c] sm:$0xf] %v1191
    // Predicated region
    $region58: #{tpu_custom_call.1} parent=1 // pred_check
      _
    $region59: #{tpu_custom_call.1} parent=1 // pred_check_branch
      %1225 = sbr.rel (0) target = $region61
    $region60: #{tpu_custom_call.1} parent=1 // pred_region
      %s1227 = ssub.s32 1024, 1024
      %1228 = vsyncadd [#allocation5], %s1227
      %s1229 = sshll.u32 [#allocation12], 4
      %s1230 = int_to_ptr.vmem [resolvable:$true] %s1229
      %1235 = dma.vmem_to_hbm [thread:$0]  %s1230, 1024, %s8, [#allocation5], 64, 64, 4
    $region61: #{tpu_custom_call.1} parent=1 // pred_fallthru
      _
    // Predicated region
    $region62: #{tpu_custom_call.1} parent=1 // pred_check
      _
    $region63: #{tpu_custom_call.1} parent=1 // pred_check_branch
      %1237 = sbr.rel (0) target = $region65
    $region64: #{tpu_custom_call.1} parent=1 // pred_region
      %1238 = dma.done [#allocation5], 1024
    $region65: #{tpu_custom_call.1} parent=1 // pred_fallthru
      _
    %1239 = vsyncpa [#allocation4], 1
    %1240 = vsyncpa [#allocation7], 1
    %1241 = vsyncpa [#allocation10], 1
    %1242 = vsyncpa [#allocation5], 1

</llo_original>
